<compile_context>
chip_gen: v6e
topology: v6e:2x2x1
jax: 0.10.0
libtpu: 0.0.40
codegen_flags: <defaults>
</compile_context>

<pallas_src>
import functools

import jax
import jax.numpy as jnp
from jax.experimental import pallas as pl
from jax.experimental.pallas import tpu as pltpu

SUBLANE = 8  # f32 sublane granularity (second-to-last block dim)


def _round_up(n: int, m: int) -> int:
    return (n + m - 1) // m * m


def _mlp_kernel(x_ref, w1_ref, b1_ref, w2_ref, b2_ref, out_ref, *, mxu_dtype, precision):
    # Cast activations to the MXU input dtype in VMEM (no extra HBM pass).
    x = x_ref[...].astype(mxu_dtype)
    # fc1: (TB, In) @ (In, H) with f32 accumulation on the MXU.
    h = jnp.dot(x, w1_ref[...], preferred_element_type=jnp.float32, precision=precision)
    # Bias + ReLU fused on the f32 accumulator (VPU).
    h = jnp.maximum(h + b1_ref[...], 0.0)
    # fc2: (TB, H) @ (H, Out) + (1, Out).
    y = jnp.dot(h.astype(mxu_dtype), w2_ref[...],
                preferred_element_type=jnp.float32, precision=precision)
    out_ref[...] = (y + b2_ref[...]).astype(out_ref.dtype)


def prepare_params(w1, b1, w2, b2, mxu_dtype=jnp.bfloat16):
    """One-time parameter prep (do at init, NOT per forward call):
    cast the matmul weights to the MXU input dtype and shape biases as (1, N)
    rows. Biases stay float32 (added to the f32 accumulator)."""
    return (jnp.asarray(w1, mxu_dtype),
            jnp.asarray(b1, jnp.float32).reshape(1, -1),
            jnp.asarray(w2, mxu_dtype),
            jnp.asarray(b2, jnp.float32).reshape(1, -1))


@functools.partial(jax.jit, static_argnames=("block_batch",))
def simple_net_forward(x, w1, b1, w2, b2, *, block_batch=512):
    """x: (B, In); w1: (In, H); b1: (H,)|(1,H); w2: (H, Out); b2: (Out,)|(1,Out).

    Weights stored as (in_features, out_features) = PyTorch weight.T.
    bf16 weights -> MXU-native path (f32 accumulation); f32 weights -> exact
    path with precision=HIGHEST.
    """
    B, In = x.shape
    H = w1.shape[1]
    Out = w2.shape[1]
    b1 = b1.reshape(1, H)    # metadata-only reshape (free)
    b2 = b2.reshape(1, Out)

    mxu_dtype = w1.dtype
    precision = jax.lax.Precision.HIGHEST if mxu_dtype == jnp.float32 else None

    # Batch tile: sublane-aligned, capped at block_batch, and capped at ~B/2 so
    # any batch > one sublane yields >= 2 grid steps ("parallel" axis -> both
    # v7x TensorCores busy). Tiny batches collapse to one step.
    if B > SUBLANE:
        tb_cap = max(SUBLANE, _round_up(pl.cdiv(B, 2), SUBLANE))
    else:
        tb_cap = _round_up(B, SUBLANE)
    TB = min(_round_up(block_batch, SUBLANE), tb_cap)
    grid_b = pl.cdiv(B, TB)  # ragged last block OK: OOB rows masked on store

    kernel = functools.partial(_mlp_kernel, mxu_dtype=mxu_dtype, precision=precision)

    # Advisory cost estimate: exactly the bytes/flops the kernel touches.
    isz = lambda a: a.dtype.itemsize
    flops = 2 * B * (In * H + H * Out)
    bytes_accessed = (x.size * isz(x) + w1.size * isz(w1) + b1.size * isz(b1)
                      + w2.size * isz(w2) + b2.size * isz(b2) + B * Out * isz(x))

    # VMEM budget: default pipelining double-buffers every operand. Only raise
    # the scoped limit when resident weights + tiles would exceed ~24 MiB
    # (never triggers at demo sizes); generous headroom for compiler scratch.
    weight_bytes = (w1.size * isz(w1) + w2.size * isz(w2)
                    + b1.size * isz(b1) + b2.size * isz(b2))
    tile_bytes = TB * In * isz(x) + TB * Out * isz(x)
    vmem_needed = 2 * (weight_bytes + tile_bytes)
    compiler_kwargs = dict(dimension_semantics=("parallel",))
    if vmem_needed > 24 * 1024 * 1024:
        compiler_kwargs["vmem_limit_bytes"] = min(
            int(vmem_needed * 1.5) + (4 << 20), 127 << 20)

    return pl.pallas_call(
        kernel,
        out_shape=jax.ShapeDtypeStruct((B, Out), x.dtype),
        grid=(grid_b,),
        in_specs=[
            # x streams over the batch grid.
            pl.BlockSpec((TB, In), lambda i: (i, 0)),
            # Weights / biases: constant block index -> VMEM-resident across grid.
            pl.BlockSpec((In, H), lambda i: (0, 0)),
            pl.BlockSpec((1, H), lambda i: (0, 0)),
            pl.BlockSpec((H, Out), lambda i: (0, 0)),
            pl.BlockSpec((1, Out), lambda i: (0, 0)),
        ],
        out_specs=pl.BlockSpec((TB, Out), lambda i: (i, 0)),
        compiler_params=pltpu.CompilerParams(**compiler_kwargs),
        cost_estimate=pl.CostEstimate(
            flops=flops, transcendentals=0, bytes_accessed=bytes_accessed),
    )(x, w1, b1, w2, b2)


def init_params(key, input_size, hidden_size, output_size):
    """Deterministic init mimicking nn.Linear's uniform(-1/sqrt(fan_in), ...).
    Weights stored as (in_features, out_features) = PyTorch weight.T."""
    k1, k2, k3, k4 = jax.random.split(key, 4)
    bound1 = 1.0 / jnp.sqrt(input_size)
    bound2 = 1.0 / jnp.sqrt(hidden_size)
    w1 = jax.random.uniform(k1, (input_size, hidden_size), jnp.float32, -bound1, bound1)
    b1 = jax.random.uniform(k2, (hidden_size,), jnp.float32, -bound1, bound1)
    w2 = jax.random.uniform(k3, (hidden_size, output_size), jnp.float32, -bound2, bound2)
    b2 = jax.random.uniform(k4, (output_size,), jnp.float32, -bound2, bound2)
    return w1, b1, w2, b2


if __name__ == "__main__":
    batch, input_size, hidden_size, output_size = 8, 16, 32, 8

    key = jax.random.PRNGKey(0)
    kx, kp, kx2 = jax.random.split(key, 3)
    x = jax.random.normal(kx, (batch, input_size), jnp.float32)
    w1, b1, w2, b2 = init_params(kp, input_size, hidden_size, output_size)

    # Plain-JAX reference (same math as the PyTorch forward).
    ref = jnp.maximum(x @ w1 + b1, 0.0) @ w2 + b2

    # Default fast path: bf16 MXU inputs, f32 accumulation (weights cast once at init).
    params_bf16 = prepare_params(w1, b1, w2, b2, mxu_dtype=jnp.bfloat16)
    out = jax.block_until_ready(simple_net_forward(x, *params_bf16))
    assert out.shape == (batch, output_size)
    assert out.dtype == x.dtype
    assert jnp.allclose(out, ref, atol=2e-2, rtol=2e-2)  # bf16-input tolerance

    # Exact path: f32 weights -> precision=HIGHEST dots.
    params_f32 = prepare_params(w1, b1, w2, b2, mxu_dtype=jnp.float32)
    out32 = jax.block_until_ready(simple_net_forward(x, *params_f32))
    hi = jax.lax.Precision.HIGHEST
    ref_hi = jnp.maximum(jnp.dot(x, w1, precision=hi) + b1, 0.0)
    ref_hi = jnp.dot(ref_hi, w2, precision=hi) + b2
    assert jnp.allclose(out32, ref_hi, atol=1e-5, rtol=1e-5)

    # Multi-step + ragged batch grid: B=50 -> TB=32, grid=2 (last block ragged);
    # with block_batch=16 -> TB=16, grid=4.
    xb = jax.random.normal(kx2, (50, input_size), jnp.float32)
    ref_b = jnp.maximum(xb @ w1 + b1, 0.0) @ w2 + b2
    out_b = jax.block_until_ready(simple_net_forward(xb, *params_bf16))
    assert out_b.shape == (50, output_size)
    assert jnp.allclose(out_b, ref_b, atol=2e-2, rtol=2e-2)
    out_b4 = jax.block_until_ready(simple_net_forward(xb, *params_bf16, block_batch=16))
    assert jnp.allclose(out_b4, ref_b, atol=2e-2, rtol=2e-2)

    # TODO(synk): compute_feature_importance needs autograd (loss.backward); not a forward-kernel op.
    print("KERNEL_OK")
</pallas_src>

<mosaic_0001>
module attributes {stable_mosaic.version = 11 : i64} {
  func.func @_mlp_kernel(%arg0: i32, %arg1: memref<8x16xf32, #tpu.memory_space<vmem>>, %arg2: memref<16x32xbf16, #tpu.memory_space<vmem>>, %arg3: memref<1x32xf32, #tpu.memory_space<vmem>>, %arg4: memref<32x8xbf16, #tpu.memory_space<vmem>>, %arg5: memref<1x8xf32, #tpu.memory_space<vmem>>, %arg6: memref<8x8xf32, #tpu.memory_space<vmem>>) attributes {dimension_semantics = [#tpu.dimension_semantics<parallel>], iteration_bounds = array<i64: 1>, scalar_prefetch = 0 : i64, scratch_operands = 0 : i64, tpu.core_type = #tpu.core_type<tc>, window_params = [{transform_indices = @transform_0, window_bounds = array<i64: 8, 16>}, {pipeline_mode = #tpu.pipeline_mode<synchronous>, transform_indices = @transform_1, window_bounds = array<i64: 16, 32>}, {pipeline_mode = #tpu.pipeline_mode<synchronous>, transform_indices = @transform_2, window_bounds = array<i64: 1, 32>}, {pipeline_mode = #tpu.pipeline_mode<synchronous>, transform_indices = @transform_3, window_bounds = array<i64: 32, 8>}, {pipeline_mode = #tpu.pipeline_mode<synchronous>, transform_indices = @transform_4, window_bounds = array<i64: 1, 8>}, {transform_indices = @transform_5, window_bounds = array<i64: 8, 8>}]} {
    %c0 = arith.constant 0 : index
    %c0_0 = arith.constant 0 : index
    %0 = vector.load %arg1[%c0, %c0_0] : memref<8x16xf32, #tpu.memory_space<vmem>>, vector<8x16xf32>
    %1 = arith.truncf %0 : vector<8x16xf32> to vector<8x16xbf16>
    %c0_1 = arith.constant 0 : index
    %c0_2 = arith.constant 0 : index
    %2 = vector.load %arg2[%c0_1, %c0_2] : memref<16x32xbf16, #tpu.memory_space<vmem>>, vector<16x32xbf16>
    %cst = arith.constant dense<0.000000e+00> : vector<8x32xf32>
    %3 = tpu.matmul %1, %2, %cst {dimension_numbers = #tpu.dot_dimension_numbers<[1], [0], [0], [1], [0, 0, 1, 1], [], []>} : vector<8x16xbf16>, vector<16x32xbf16>, vector<8x32xf32> -> vector<8x32xf32>
    %c0_3 = arith.constant 0 : index
    %c0_4 = arith.constant 0 : index
    %4 = vector.load %arg3[%c0_3, %c0_4] : memref<1x32xf32, #tpu.memory_space<vmem>>, vector<1x32xf32>
    %5 = vector.broadcast %4 : vector<1x32xf32> to vector<8x32xf32>
    %6 = arith.addf %3, %5 : vector<8x32xf32>
    %cst_5 = arith.constant 0.000000e+00 : f32
    %7 = vector.broadcast %cst_5 : f32 to vector<8x32xf32>
    %8 = arith.maximumf %6, %7 : vector<8x32xf32>
    %9 = arith.truncf %8 : vector<8x32xf32> to vector<8x32xbf16>
    %c0_6 = arith.constant 0 : index
    %c0_7 = arith.constant 0 : index
    %10 = vector.load %arg4[%c0_6, %c0_7] : memref<32x8xbf16, #tpu.memory_space<vmem>>, vector<32x8xbf16>
    %cst_8 = arith.constant dense<0.000000e+00> : vector<8x8xf32>
    %11 = tpu.matmul %9, %10, %cst_8 {dimension_numbers = #tpu.dot_dimension_numbers<[1], [0], [0], [1], [0, 0, 1, 1], [], []>} : vector<8x32xbf16>, vector<32x8xbf16>, vector<8x8xf32> -> vector<8x8xf32>
    %c0_9 = arith.constant 0 : index
    %c0_10 = arith.constant 0 : index
    %12 = vector.load %arg5[%c0_9, %c0_10] : memref<1x8xf32, #tpu.memory_space<vmem>>, vector<1x8xf32>
    %13 = vector.broadcast %12 : vector<1x8xf32> to vector<8x8xf32>
    %14 = arith.addf %11, %13 : vector<8x8xf32>
    %c0_11 = arith.constant 0 : index
    %c0_12 = arith.constant 0 : index
    %15 = vector.load %arg6[%c0_11, %c0_12] : memref<8x8xf32, #tpu.memory_space<vmem>>, vector<8x8xf32>
    tpu.vector_store %arg6[%c0_11, %c0_12], %14 {strides = array<i32>} : memref<8x8xf32, #tpu.memory_space<vmem>>, vector<8x8xf32>,
    return
  }
  func.func @transform_0(%arg0: i32) -> (i32, i32) {
    %c0_i32 = arith.constant 0 : i32
    %c0_i32_0 = arith.constant 0 : i32
    return %arg0, %c0_i32 : i32, i32
  }
  func.func @transform_1(%arg0: i32) -> (i32, i32) {
    %c0_i32 = arith.constant 0 : i32
    %c0_i32_0 = arith.constant 0 : i32
    %c0_i32_1 = arith.constant 0 : i32
    return %c0_i32, %c0_i32_0 : i32, i32
  }
  func.func @transform_2(%arg0: i32) -> (i32, i32) {
    %c0_i32 = arith.constant 0 : i32
    %c0_i32_0 = arith.constant 0 : i32
    %c0_i32_1 = arith.constant 0 : i32
    return %c0_i32, %c0_i32_0 : i32, i32
  }
  func.func @transform_3(%arg0: i32) -> (i32, i32) {
    %c0_i32 = arith.constant 0 : i32
    %c0_i32_0 = arith.constant 0 : i32
    %c0_i32_1 = arith.constant 0 : i32
    return %c0_i32, %c0_i32_0 : i32, i32
  }
  func.func @transform_4(%arg0: i32) -> (i32, i32) {
    %c0_i32 = arith.constant 0 : i32
    %c0_i32_0 = arith.constant 0 : i32
    %c0_i32_1 = arith.constant 0 : i32
    return %c0_i32, %c0_i32_0 : i32, i32
  }
  func.func @transform_5(%arg0: i32) -> (i32, i32) {
    %c0_i32 = arith.constant 0 : i32
    %c0_i32_0 = arith.constant 0 : i32
    return %arg0, %c0_i32 : i32, i32
  }
}

</mosaic_0001>

<llo_original>
// kernel: simple_net_forward.1
$region0: #{simple_net_forward.1}
  #allocation0 [shape = 'u32[]', space=smem, size = 0x4, offset = 0x4, fixed_abs, tag = 'smem constant byte address 0x4 - core index']
  #allocation1 [shape = 'u32[144,128]{1,0:T(1,128)}', space=vmem, size = 0x12000, scoped, tag = 'internal scratch']
  %s0 = inlined_call_operand.vmem [shape: f32[8,16], index: 0, kind: input, shape index: {}]
  %s1 = inlined_call_operand.vmem [shape: bf16[16,32], index: 1, kind: input, shape index: {}]
  %s2 = inlined_call_operand.vmem [shape: f32[1,32], index: 2, kind: input, shape index: {}]
  %s3 = inlined_call_operand.vmem [shape: bf16[32,8], index: 3, kind: input, shape index: {}]
  %s4 = inlined_call_operand.vmem [shape: f32[1,8], index: 4, kind: input, shape index: {}]
  %s5 = inlined_call_operand.hbm [shape: f32[8,8], index: 5, kind: output, shape index: {}]
  %s6 = sld [smem:[#allocation0]]
  $region30: #{simple_net_forward.1} parent=0
    _
  %s8 = ssub.s32 1, %s6
  %s9 = scalar_select 0, %s8, %s6
  $region1: #{simple_net_forward.1} parent=0
    #allocation2 [shape = 'u8[4096]{0}', space=vmem, size = 0x1000, scoped, tag = 'output window, operand 0, single buffered']
    #allocation3 [shape = 's32[1]{0}', space=sflag, size = 0x4, scoped, tag = 'scoped memory for simple_net_forward.1']
    %10 = vsyncpa [#allocation3], 0
    // Predicated region
    $region2: #{simple_net_forward.1} parent=1 // pred_check
      _
    $region3: #{simple_net_forward.1} parent=1 // pred_check_branch
      %12 = sbr.rel (0) target = $region5
    $region4: #{simple_net_forward.1} parent=1 // pred_region
      _
    $region5: #{simple_net_forward.1} parent=1 // pred_fallthru
      _
    // Predicated region
    $region6: #{simple_net_forward.1} parent=1 // pred_check
      _
    $region7: #{simple_net_forward.1} parent=1 // pred_check_branch
      %14 = sbr.rel (0) target = $region9
    $region8: #{simple_net_forward.1} parent=1 // pred_region
      _
    $region9: #{simple_net_forward.1} parent=1 // pred_fallthru
      _
    // Predicated region
    $region10: #{simple_net_forward.1} parent=1 // pred_check
      _
    $region11: #{simple_net_forward.1} parent=1 // pred_check_branch
      %16 = sbr.rel (0) target = $region13
    $region12: #{simple_net_forward.1} parent=1 // pred_region
      _
    $region13: #{simple_net_forward.1} parent=1 // pred_fallthru
      _
    // Predicated region
    $region14: #{simple_net_forward.1} parent=1 // pred_check
      _
    $region15: #{simple_net_forward.1} parent=1 // pred_check_branch
      %18 = sbr.rel (0) target = $region17
    $region16: #{simple_net_forward.1} parent=1 // pred_region
      _
    $region17: #{simple_net_forward.1} parent=1 // pred_fallthru
      _
    // Predicated region
    $region18: #{simple_net_forward.1} parent=1 // pred_check
      _
    $region19: #{simple_net_forward.1} parent=1 // pred_check_branch
      %20 = sbr.rel (0) target = $region21
    $region20: #{simple_net_forward.1} parent=1 // pred_region
      _
    $region21: #{simple_net_forward.1} parent=1 // pred_fallthru
      _
    %v22 = vld [vmem:[%s0] sm:$0xff]
    %v23 = vpack.c.bf16 %v22, %v22
    %v24 = vld [vmem:[%s1] sm:$0xf]
    %v25 = vld [vmem:[%s1 + $0x4] sm:$0xf]
    %v26 = vld [vmem:[%s2] sm:$0x1]
    %v28 = vlaneseq
    %v29 = vshrl.u32 %v28, 7
    %v30 = vsub.s32 0, %v29
    %v31 = vrot.slane %v26, %v30
    %v35 = vunpack.c.l.b16 %v24
    %v36 = vunpack.c.l.b16 %v25
    %v37 = vpack.c.b16 %v36, %v35
    %vm39 = vcmask 130048
    %v41 = vsel %vm39, %v23, 0
    %43 = vmatprep.subr.bf16.mxu0 0
    %44 = vmatpush1.bf16.msra.mxu0 0
    %45 = vmatprep.subr.bf16.mxu0 0
    %46 = vmatpush1.bf16.msra.mxu0 0
    %47 = vmatprep.subr.bf16.mxu0 0
    %48 = vmatpush1.bf16.msra.mxu0 0
    %49 = vmatprep.subr.bf16.mxu0 0
    %50 = vmatpush1.bf16.msra.mxu0 0
    %51 = vmatprep.subr.bf16.mxu0 0
    %52 = vmatpush1.bf16.msra.mxu0 0
    %53 = vmatprep.subr.bf16.mxu0 0
    %54 = vmatpush1.bf16.msra.mxu0 0
    %55 = vmatprep.subr.bf16.mxu0 0
    %56 = vmatpush1.bf16.msra.mxu0 0
    %57 = vmatprep.subr.bf16.mxu0 0
    %58 = vmatpush1.bf16.msra.mxu0 %v37
    %59 = vmatprep.subr.bf16.mxu0 0
    %60 = vmatpush2.bf16.msra.mxu0 0
    %61 = vmatprep.subr.bf16.mxu0 0
    %62 = vmatpush2.bf16.msra.mxu0 0
    %63 = vmatprep.subr.bf16.mxu0 0
    %64 = vmatpush2.bf16.msra.mxu0 0
    %65 = vmatprep.subr.bf16.mxu0 0
    %66 = vmatpush2.bf16.msra.mxu0 0
    %67 = vmatprep.subr.bf16.mxu0 0
    %68 = vmatpush2.bf16.msra.mxu0 0
    %69 = vmatprep.subr.bf16.mxu0 0
    %70 = vmatpush2.bf16.msra.mxu0 0
    %71 = vmatprep.subr.bf16.mxu0 0
    %72 = vmatpush2.bf16.msra.mxu0 0
    %73 = vmatprep.subr.bf16.mxu0 0
    %74 = vmatpush2.bf16.msra.mxu0 0
    %75 = vmatprep.mubr.bf16.mxu0 0
    %76 = vmatmul.mubr.bf16.gmra.mxu0 %v41
    %v77 = vpop.f32.mrf.mxu0
    %v78 = vadd.f32 %v31, %v77
    %v79 = vpop.f32.mrf.mxu0
    %v80 = vpop.f32.mrf.mxu0
    %v81 = vpop.f32.mrf.mxu0
    %82 = vdwg.mxu0
    %v83 = vmax.f32 %v78, 0.0
    %v84 = vpack.c.bf16 %v83, %v83
    %v85 = vld [vmem:[%s3] sm:$0xf]
    %v86 = vld [vmem:[%s3 + $0x4] sm:$0xf]
    %v87 = vld [vmem:[%s3 + $0x8] sm:$0xf]
    %v88 = vld [vmem:[%s3 + $0xc] sm:$0xf]
    %v89 = vld [vmem:[%s4] sm:$0x1]
    %v91 = vlaneseq
    %v92 = vshrl.u32 %v91, 7
    %v93 = vsub.s32 0, %v92
    %v94 = vrot.slane %v89, %v93
    %v100 = vunpack.c.l.b16 %v85
    %v101 = vunpack.c.l.b16 %v86
    %v102 = vunpack.c.l.b16 %v87
    %v103 = vunpack.c.l.b16 %v88
    %v104 = vpack.c.b16 %v101, %v100
    %v105 = vpack.c.b16 %v103, %v102
    %vm108 = vcmask 261120
    %v110 = vsel %vm108, %v84, 0
    %112 = vmatprep.subr.bf16.mxu0 0
    %113 = vmatpush1.bf16.msra.mxu0 0
    %114 = vmatprep.subr.bf16.mxu0 0
    %115 = vmatpush1.bf16.msra.mxu0 0
    %116 = vmatprep.subr.bf16.mxu0 0
    %117 = vmatpush1.bf16.msra.mxu0 0
    %118 = vmatprep.subr.bf16.mxu0 0
    %119 = vmatpush1.bf16.msra.mxu0 0
    %120 = vmatprep.subr.bf16.mxu0 0
    %121 = vmatpush1.bf16.msra.mxu0 0
    %122 = vmatprep.subr.bf16.mxu0 0
    %123 = vmatpush1.bf16.msra.mxu0 0
    %124 = vmatprep.subr.bf16.mxu0 0
    %125 = vmatpush1.bf16.msra.mxu0 %v105
    %126 = vmatprep.subr.bf16.mxu0 0
    %127 = vmatpush1.bf16.msra.mxu0 %v104
    %128 = vmatprep.subr.bf16.mxu0 0
    %129 = vmatpush2.bf16.msra.mxu0 0
    %130 = vmatprep.subr.bf16.mxu0 0
    %131 = vmatpush2.bf16.msra.mxu0 0
    %132 = vmatprep.subr.bf16.mxu0 0
    %133 = vmatpush2.bf16.msra.mxu0 0
    %134 = vmatprep.subr.bf16.mxu0 0
    %135 = vmatpush2.bf16.msra.mxu0 0
    %136 = vmatprep.subr.bf16.mxu0 0
    %137 = vmatpush2.bf16.msra.mxu0 0
    %138 = vmatprep.subr.bf16.mxu0 0
    %139 = vmatpush2.bf16.msra.mxu0 0
    %140 = vmatprep.subr.bf16.mxu0 0
    %141 = vmatpush2.bf16.msra.mxu0 0
    %142 = vmatprep.subr.bf16.mxu0 0
    %143 = vmatpush2.bf16.msra.mxu0 0
    %144 = vmatprep.mubr.bf16.mxu0 0
    %145 = vmatmul.mubr.bf16.gmra.mxu0 %v110
    %v146 = vpop.f32.mrf.mxu0
    %v147 = vadd.f32 %v94, %v146
    %v148 = vpop.f32.mrf.mxu0
    %v149 = vpop.f32.mrf.mxu0
    %v150 = vpop.f32.mrf.mxu0
    %151 = vdwg.mxu0
    %vm152 = vcmask 64512
    %153 = vst.msk [vmem:[#allocation2] sm:$0xff] %vm152, %v147
    // Predicated region
    $region22: #{simple_net_forward.1} parent=1 // pred_check
      _
    $region23: #{simple_net_forward.1} parent=1 // pred_check_branch
      %155 = sbr.rel (0) target = $region25
    $region24: #{simple_net_forward.1} parent=1 // pred_region
      %s157 = ssub.s32 128, 128
      %158 = vsyncadd [#allocation3], %s157
      %s160 = sshll.u32 [#allocation2], 4
      %s161 = int_to_ptr.vmem [resolvable:$true] %s160
      %163 = dma.vmem_to_hbm [thread:$0]  %s161, 128, %s5, [#allocation3]
    $region25: #{simple_net_forward.1} parent=1 // pred_fallthru
      _
    // Predicated region
    $region26: #{simple_net_forward.1} parent=1 // pred_check
      _
    $region27: #{simple_net_forward.1} parent=1 // pred_check_branch
      %165 = sbr.rel (0) target = $region29
    $region28: #{simple_net_forward.1} parent=1 // pred_region
      %166 = dma.done [#allocation3], 128
    $region29: #{simple_net_forward.1} parent=1 // pred_fallthru
      _
    %167 = vsyncpa [#allocation3], 1

</llo_original>
